<compile_context>
chip_gen: v7x
topology: tpu7x:2x2x1
jax: 0.10.0
libtpu: 0.0.40
codegen_flags: <defaults>
</compile_context>

<pallas_src>
import jax
import jax.numpy as jnp
import numpy as np
from jax.experimental import pallas as pl
from jax.experimental.pallas import tpu as pltpu


def drillnet_kernel(x_ref, wconv_ref, bconv_ref, w1t_ref, b1_ref, w2_ref, b2_ref,
                    out_ref):
    # ---- conv1 + flatten + bias + ReLU, as one lane-dense MXU matmul ---------
    x = x_ref[...]                                              # (B, C_in*D)
    h = jnp.maximum(
        jnp.dot(x, wconv_ref[...], preferred_element_type=jnp.float32)
        + bconv_ref[...], 0.0)                                  # (B, F)

    # ---- fc1 + ReLU ----------------------------------------------------------
    h1 = jnp.maximum(
        jnp.dot(h, w1t_ref[...], preferred_element_type=jnp.float32)
        + b1_ref[...], 0.0)                                     # (B, F//2)

    # ---- fc2 (out_features == 1) on the VPU/XLU instead of a 1-column MXU op -
    out_ref[...] = (jnp.sum(h1 * w2_ref[...], axis=-1, keepdims=True)
                    + b2_ref[...])                              # (B, 1)


def _conv_toeplitz(Wconv, C_in, C_out, D):
    """Build the (C_in*D, C_out*D) matrix equivalent to conv1 (kh==1 row only,
    since H==1 with padding=1 zeroes the other two kernel rows) followed by
    torch's channel-major flatten."""
    Wmid = Wconv[:, :, 1, :]                                    # (C_out, C_in, 3)
    ci_idx = jnp.arange(C_in * D) // D                          # input channel
    wi_idx = jnp.arange(C_in * D) % D                           # input width
    co_idx = jnp.arange(C_out * D) // D                         # output channel
    wo_idx = jnp.arange(C_out * D) % D                          # output width
    kw = wi_idx[:, None] - wo_idx[None, :] + 1                  # kernel tap index
    valid = (kw >= 0) & (kw <= 2)
    vals = Wmid[co_idx[None, :], ci_idx[:, None], jnp.clip(kw, 0, 2)]
    return jnp.where(valid, vals, 0.0).astype(jnp.float32)      # (C_in*D, C_out*D)


def drillnet_forward(x4, params):
    """x4: (B, C_in, 1, D) NCHW, same as the PyTorch module's input."""
    B, C_in, H, D = x4.shape
    assert H == 1, "DrillNet sanity-check input has H == 1"
    Wconv, bconv, W1, b1, W2, b2 = params
    C_out = Wconv.shape[0]

    # One-time parameter plumbing (plain JAX glue, outside the kernel).
    x_flat = x4.reshape(B, C_in * D).astype(jnp.float32)        # channel-major
    # Sublane-align the batch so the kernel never issues masked vector ops.
    B_pad = ((B + 7) // 8) * 8
    if B_pad != B:
        x_flat = jnp.pad(x_flat, ((0, B_pad - B), (0, 0)))
    wconv_mat = _conv_toeplitz(Wconv, C_in, C_out, D)           # (C_in*D, C_out*D)
    bconv_flat = jnp.repeat(bconv, D)[None, :]                  # (1, C_out*D)
    w1t = W1.T.astype(jnp.float32)                              # (F, F//2)
    b1r = b1[None, :]                                           # (1, F//2)
    w2r = W2.astype(jnp.float32)                                # (1, F//2) row
    b2r = b2[None, :]                                           # (1, 1)

    vmem = pl.BlockSpec(memory_space=pltpu.MemorySpace.VMEM)
    out = pl.pallas_call(
        drillnet_kernel,
        out_shape=jax.ShapeDtypeStruct((B_pad, 1), jnp.float32),
        in_specs=[vmem] * 7,
        out_specs=vmem,
    )(x_flat, wconv_mat, bconv_flat, w1t, b1r, w2r, b2r)
    return out[:B]


def drillnet_reference(x4, params):
    """Pure-JAX reference mirroring the PyTorch forward (full 3x3 conv)."""
    Wconv, bconv, W1, b1, W2, b2 = params
    conv = jax.lax.conv_general_dilated(
        x4, Wconv, window_strides=(1, 1), padding=((1, 1), (1, 1)),
        dimension_numbers=('NCHW', 'OIHW', 'NCHW'))
    conv = conv + bconv[None, :, None, None]
    h = jnp.maximum(conv, 0.0)
    flat = h.reshape(x4.shape[0], -1)
    h1 = jnp.maximum(flat @ W1.T + b1, 0.0)
    return h1 @ W2.T + b2


if __name__ == "__main__":
    # args['input_shape'] = (4, 32); args['first_out_channels'] = 8;
    # args['kernel_size'] = 3 (the only kernel size consistent with fc1's size).
    B, C_in, D = 8, 4, 32
    C_out = 8
    F_dim = C_out * D          # 256 = size_of_fc1
    H_dim = F_dim // 2         # 128

    key = jax.random.PRNGKey(0)
    kx, k1, k2, k3, k4, k5, k6 = jax.random.split(key, 7)
    x4 = jax.random.normal(kx, (B, C_in, 1, D), jnp.float32)
    Wconv = 0.1 * jax.random.normal(k1, (C_out, C_in, 3, 3), jnp.float32)
    bconv = 0.1 * jax.random.normal(k2, (C_out,), jnp.float32)
    W1 = 0.1 * jax.random.normal(k3, (H_dim, F_dim), jnp.float32)
    b1 = 0.1 * jax.random.normal(k4, (H_dim,), jnp.float32)
    W2 = 0.1 * jax.random.normal(k5, (1, H_dim), jnp.float32)
    b2 = 0.1 * jax.random.normal(k6, (1,), jnp.float32)
    params = (Wconv, bconv, W1, b1, W2, b2)
    # NOTE: self.loss = nn.MSELoss() is a training-time attribute, not part of
    # the forward pass, so it is intentionally not implemented here.

    out = jax.block_until_ready(drillnet_forward(x4, params))
    ref = jax.block_until_ready(drillnet_reference(x4, params))
    assert out.shape == (B, 1)
    np.testing.assert_allclose(np.asarray(out), np.asarray(ref),
                               rtol=1e-4, atol=1e-4)
    print("KERNEL_OK")
</pallas_src>

<mosaic_0001>
module attributes {stable_mosaic.version = 11 : i64} {
  func.func @drillnet_kernel(%arg0: memref<8x128xf32, #tpu.memory_space<vmem>>, %arg1: memref<128x256xf32, #tpu.memory_space<vmem>>, %arg2: memref<1x256xf32, #tpu.memory_space<vmem>>, %arg3: memref<256x128xf32, #tpu.memory_space<vmem>>, %arg4: memref<1x128xf32, #tpu.memory_space<vmem>>, %arg5: memref<1x128xf32, #tpu.memory_space<vmem>>, %arg6: memref<1x1xf32, #tpu.memory_space<vmem>>, %arg7: memref<8x1xf32, #tpu.memory_space<vmem>>) attributes {dimension_semantics = [], scalar_prefetch = 0 : i64, scratch_operands = 0 : i64, tpu.core_type = #tpu.core_type<tc>} {
    %c0 = arith.constant 0 : index
    %c0_0 = arith.constant 0 : index
    %0 = vector.load %arg0[%c0, %c0_0] : memref<8x128xf32, #tpu.memory_space<vmem>>, vector<8x128xf32>
    %c0_1 = arith.constant 0 : index
    %c0_2 = arith.constant 0 : index
    %1 = vector.load %arg1[%c0_1, %c0_2] : memref<128x256xf32, #tpu.memory_space<vmem>>, vector<128x256xf32>
    %cst = arith.constant dense<0.000000e+00> : vector<8x256xf32>
    %2 = tpu.matmul %0, %1, %cst {dimension_numbers = #tpu.dot_dimension_numbers<[1], [0], [0], [1], [0, 0, 1, 1], [], []>} : vector<8x128xf32>, vector<128x256xf32>, vector<8x256xf32> -> vector<8x256xf32>
    %c0_3 = arith.constant 0 : index
    %c0_4 = arith.constant 0 : index
    %3 = vector.load %arg2[%c0_3, %c0_4] : memref<1x256xf32, #tpu.memory_space<vmem>>, vector<1x256xf32>
    %4 = vector.broadcast %3 : vector<1x256xf32> to vector<8x256xf32>
    %5 = arith.addf %2, %4 : vector<8x256xf32>
    %cst_5 = arith.constant 0.000000e+00 : f32
    %6 = vector.broadcast %cst_5 : f32 to vector<8x256xf32>
    %7 = arith.maximumf %5, %6 : vector<8x256xf32>
    %c0_6 = arith.constant 0 : index
    %c0_7 = arith.constant 0 : index
    %8 = vector.load %arg3[%c0_6, %c0_7] : memref<256x128xf32, #tpu.memory_space<vmem>>, vector<256x128xf32>
    %cst_8 = arith.constant dense<0.000000e+00> : vector<8x128xf32>
    %9 = tpu.matmul %7, %8, %cst_8 {dimension_numbers = #tpu.dot_dimension_numbers<[1], [0], [0], [1], [0, 0, 1, 1], [], []>} : vector<8x256xf32>, vector<256x128xf32>, vector<8x128xf32> -> vector<8x128xf32>
    %c0_9 = arith.constant 0 : index
    %c0_10 = arith.constant 0 : index
    %10 = vector.load %arg4[%c0_9, %c0_10] : memref<1x128xf32, #tpu.memory_space<vmem>>, vector<1x128xf32>
    %11 = vector.broadcast %10 : vector<1x128xf32> to vector<8x128xf32>
    %12 = arith.addf %9, %11 : vector<8x128xf32>
    %cst_11 = arith.constant 0.000000e+00 : f32
    %13 = vector.broadcast %cst_11 : f32 to vector<8x128xf32>
    %14 = arith.maximumf %12, %13 : vector<8x128xf32>
    %c0_12 = arith.constant 0 : index
    %c0_13 = arith.constant 0 : index
    %15 = vector.load %arg5[%c0_12, %c0_13] : memref<1x128xf32, #tpu.memory_space<vmem>>, vector<1x128xf32>
    %16 = vector.broadcast %15 : vector<1x128xf32> to vector<8x128xf32>
    %17 = arith.mulf %14, %16 : vector<8x128xf32>
    %cst_14 = arith.constant dense<0.000000e+00> : vector<8xf32>
    %18 = vector.multi_reduction <add>, %17, %cst_14 [1] : vector<8x128xf32> to vector<8xf32>
    %19 = vector.shape_cast %18 : vector<8xf32> to vector<8x1xf32>
    %c0_15 = arith.constant 0 : index
    %c0_16 = arith.constant 0 : index
    %20 = vector.load %arg6[%c0_15, %c0_16] : memref<1x1xf32, #tpu.memory_space<vmem>>, vector<1x1xf32>
    %21 = vector.broadcast %20 : vector<1x1xf32> to vector<8x1xf32>
    %22 = arith.addf %19, %21 : vector<8x1xf32>
    %c0_17 = arith.constant 0 : index
    %c0_18 = arith.constant 0 : index
    %23 = vector.load %arg7[%c0_17, %c0_18] : memref<8x1xf32, #tpu.memory_space<vmem>>, vector<8x1xf32>
    tpu.vector_store %arg7[%c0_17, %c0_18], %22 {strides = array<i32>} : memref<8x1xf32, #tpu.memory_space<vmem>>, vector<8x1xf32>,
    return
  }
}

</mosaic_0001>

<llo_original>
// kernel: tpu_custom_call.1
$region0: #{tpu_custom_call.1}
  #allocation0 [shape = 'u32[]', space=smem, size = 0x4, offset = 0x4, fixed_abs, tag = 'smem constant byte address 0x4 - core index']
  #allocation1 [shape = 'u32[144,128]{1,0:T(1,128)}', space=vmem, size = 0x12000, scoped, tag = 'internal scratch']
  #allocation2 [shape = 'f32[1,1]{1,0:T(1,128)S(1)}', space=vmem, size = 0x200, scoped, tag = 'scoped memory for tpu_custom_call.1']
  %s0 = inlined_call_operand.hbm [shape: f32[8,128], index: 0, kind: input, shape index: {}]
  %s1 = inlined_call_operand.hbm [shape: f32[128,256], index: 1, kind: input, shape index: {}]
  %s2 = inlined_call_operand.vmem [shape: f32[1,256], index: 2, kind: input, shape index: {}]
  %s3 = inlined_call_operand.hbm [shape: f32[256,128], index: 3, kind: input, shape index: {}]
  %s4 = inlined_call_operand.vmem [shape: f32[1,128], index: 4, kind: input, shape index: {}]
  %s5 = inlined_call_operand.vmem [shape: f32[1,128], index: 5, kind: input, shape index: {}]
  %s6 = inlined_call_operand.<no memory space> [shape: f32[1,1], index: 6, kind: input, shape index: {}]
  %s7 = inlined_call_operand.vmem [shape: f32[8,1], index: 7, kind: output, shape index: {}]
  %s8 = sld [smem:[#allocation0]]
  $region50: #{tpu_custom_call.1} parent=0
    _
  %s10 = ssub.s32 1, %s8
  %s11 = scalar_select 0, %s10, %s8
  %v12 = vstv %s6
  %13 = vst [vmem:[#allocation2] sm:$0x1] %v12
  $region1: #{tpu_custom_call.1} parent=0
    #allocation3 [shape = 'u8[4096]{0}', space=vmem, size = 0x1000, scoped, tag = 'input window, operand 0, single buffered']
    #allocation4 [shape = 's32[1]{0}', space=sflag, size = 0x4, scoped, tag = 'scoped memory for tpu_custom_call.1']
    #allocation5 [shape = 'u8[131072]{0}', space=vmem, size = 0x20000, scoped, tag = 'input window, operand 1, single buffered']
    #allocation6 [shape = 's32[1]{0}', space=sflag, size = 0x4, scoped, tag = 'scoped memory for tpu_custom_call.1']
    #allocation7 [shape = 'u8[131072]{0}', space=vmem, size = 0x20000, scoped, tag = 'input window, operand 3, single buffered']
    %14 = vsyncpa [#allocation4], 0
    %15 = vsyncpa [#allocation6], 0
    // Predicated region
    $region2: #{tpu_custom_call.1} parent=1 // pred_check
      _
    $region3: #{tpu_custom_call.1} parent=1 // pred_check_branch
      %17 = sbr.rel (0) target = $region5
    $region4: #{tpu_custom_call.1} parent=1 // pred_region
      %s19 = ssub.s32 128, 128
      %20 = vsyncadd [#allocation4], %s19
      %s22 = sshll.u32 [#allocation3], 4
      %s23 = int_to_ptr.vmem [resolvable:$true] %s22
      %25 = dma.hbm_to_vmem [thread:$0]  %s0, 128, %s23, [#allocation4]
    $region5: #{tpu_custom_call.1} parent=1 // pred_fallthru
      _
    // Predicated region
    $region6: #{tpu_custom_call.1} parent=1 // pred_check
      _
    $region7: #{tpu_custom_call.1} parent=1 // pred_check_branch
      %27 = sbr.rel (0) target = $region9
    $region8: #{tpu_custom_call.1} parent=1 // pred_region
      %s29 = ssub.s32 4096, 4096
      %30 = vsyncadd [#allocation6], %s29
      %s31 = sshll.u32 [#allocation5], 4
      %s32 = int_to_ptr.vmem [resolvable:$true] %s31
      %37 = dma.hbm_to_vmem [thread:$0]  %s1, 4096, %s32, [#allocation6], 256, 256, 16
    $region9: #{tpu_custom_call.1} parent=1 // pred_fallthru
      _
    // Predicated region
    $region10: #{tpu_custom_call.1} parent=1 // pred_check
      _
    $region11: #{tpu_custom_call.1} parent=1 // pred_check_branch
      %39 = sbr.rel (0) target = $region13
    $region12: #{tpu_custom_call.1} parent=1 // pred_region
      _
    $region13: #{tpu_custom_call.1} parent=1 // pred_fallthru
      _
    // Predicated region
    $region14: #{tpu_custom_call.1} parent=1 // pred_check
      _
    $region15: #{tpu_custom_call.1} parent=1 // pred_check_branch
      %41 = sbr.rel (0) target = $region17
    $region16: #{tpu_custom_call.1} parent=1 // pred_region
      %s43 = ssub.s32 4096, 4096
      %44 = vsyncadd [#allocation6], %s43
      %s45 = sshll.u32 [#allocation7], 4
      %s46 = int_to_ptr.vmem [resolvable:$true] %s45
      %51 = dma.hbm_to_vmem [thread:$0]  %s3, 4096, %s46, [#allocation6], 128, 128, 8
    $region17: #{tpu_custom_call.1} parent=1 // pred_fallthru
      _
    // Predicated region
    $region18: #{tpu_custom_call.1} parent=1 // pred_check
      _
    $region19: #{tpu_custom_call.1} parent=1 // pred_check_branch
      %53 = sbr.rel (0) target = $region21
    $region20: #{tpu_custom_call.1} parent=1 // pred_region
      _
    $region21: #{tpu_custom_call.1} parent=1 // pred_fallthru
      _
    // Predicated region
    $region22: #{tpu_custom_call.1} parent=1 // pred_check
      _
    $region23: #{tpu_custom_call.1} parent=1 // pred_check_branch
      %55 = sbr.rel (0) target = $region25
    $region24: #{tpu_custom_call.1} parent=1 // pred_region
      _
    $region25: #{tpu_custom_call.1} parent=1 // pred_fallthru
      _
    // Predicated region
    $region26: #{tpu_custom_call.1} parent=1 // pred_check
      _
    $region27: #{tpu_custom_call.1} parent=1 // pred_check_branch
      %57 = sbr.rel (0) target = $region29
    $region28: #{tpu_custom_call.1} parent=1 // pred_region
      _
    $region29: #{tpu_custom_call.1} parent=1 // pred_fallthru
      _
    // Predicated region
    $region30: #{tpu_custom_call.1} parent=1 // pred_check
      _
    $region31: #{tpu_custom_call.1} parent=1 // pred_check_branch
      %59 = sbr.rel (0) target = $region33
    $region32: #{tpu_custom_call.1} parent=1 // pred_region
      %60 = dma.done [#allocation4], 128
    $region33: #{tpu_custom_call.1} parent=1 // pred_fallthru
      _
    // Predicated region
    $region34: #{tpu_custom_call.1} parent=1 // pred_check
      _
    $region35: #{tpu_custom_call.1} parent=1 // pred_check_branch
      %62 = sbr.rel (0) target = $region37
    $region36: #{tpu_custom_call.1} parent=1 // pred_region
      %63 = dma.done [#allocation6], 4096
    $region37: #{tpu_custom_call.1} parent=1 // pred_fallthru
      _
    // Predicated region
    $region38: #{tpu_custom_call.1} parent=1 // pred_check
      _
    $region39: #{tpu_custom_call.1} parent=1 // pred_check_branch
      %65 = sbr.rel (0) target = $region41
    $region40: #{tpu_custom_call.1} parent=1 // pred_region
      %66 = dma.done [#allocation6], 4096
    $region41: #{tpu_custom_call.1} parent=1 // pred_fallthru
      _
    %v67 = vld [vmem:[#allocation3] sm:$0xff]
    %v68 = vld [vmem:[#allocation5] sm:$0xff]
    %v69 = vld [vmem:[#allocation5 + $0x8] sm:$0xff]
    %v70 = vld [vmem:[#allocation5 + $0x10] sm:$0xff]
    %v71 = vld [vmem:[#allocation5 + $0x18] sm:$0xff]
    %v72 = vld [vmem:[#allocation5 + $0x20] sm:$0xff]
    %v73 = vld [vmem:[#allocation5 + $0x28] sm:$0xff]
    %v74 = vld [vmem:[#allocation5 + $0x30] sm:$0xff]
    %v75 = vld [vmem:[#allocation5 + $0x38] sm:$0xff]
    %v76 = vld [vmem:[#allocation5 + $0x40] sm:$0xff]
    %v77 = vld [vmem:[#allocation5 + $0x48] sm:$0xff]
    %v78 = vld [vmem:[#allocation5 + $0x50] sm:$0xff]
    %v79 = vld [vmem:[#allocation5 + $0x58] sm:$0xff]
    %v80 = vld [vmem:[#allocation5 + $0x60] sm:$0xff]
    %v81 = vld [vmem:[#allocation5 + $0x68] sm:$0xff]
    %v82 = vld [vmem:[#allocation5 + $0x70] sm:$0xff]
    %v83 = vld [vmem:[#allocation5 + $0x78] sm:$0xff]
    %v84 = vld [vmem:[#allocation5 + $0x80] sm:$0xff]
    %v85 = vld [vmem:[#allocation5 + $0x88] sm:$0xff]
    %v86 = vld [vmem:[#allocation5 + $0x90] sm:$0xff]
    %v87 = vld [vmem:[#allocation5 + $0x98] sm:$0xff]
    %v88 = vld [vmem:[#allocation5 + $0xa0] sm:$0xff]
    %v89 = vld [vmem:[#allocation5 + $0xa8] sm:$0xff]
    %v90 = vld [vmem:[#allocation5 + $0xb0] sm:$0xff]
    %v91 = vld [vmem:[#allocation5 + $0xb8] sm:$0xff]
    %v92 = vld [vmem:[#allocation5 + $0xc0] sm:$0xff]
    %v93 = vld [vmem:[#allocation5 + $0xc8] sm:$0xff]
    %v94 = vld [vmem:[#allocation5 + $0xd0] sm:$0xff]
    %v95 = vld [vmem:[#allocation5 + $0xd8] sm:$0xff]
    %v96 = vld [vmem:[#allocation5 + $0xe0] sm:$0xff]
    %v97 = vld [vmem:[#allocation5 + $0xe8] sm:$0xff]
    %v98 = vld [vmem:[#allocation5 + $0xf0] sm:$0xff]
    %v99 = vld [vmem:[#allocation5 + $0xf8] sm:$0xff]
    %v100 = vld [vmem:[%s2] sm:$0x3]
    %v102 = vlaneseq
    %v103 = vshrl.u32 %v102, 7
    %v104 = vsub.s32 0, %v103
    %v105 = vrot.slane %v100, %v104
    %v106 = vlaneseq
    %v107 = vshrl.u32 %v106, 7
    %v108 = vsub.s32 1, %v107
    %v109 = vrot.slane %v100, %v108
    %112 = vmatprep.subr.mxu0 %v69
    %113 = vmatpush1.msra.mxu0 %v68
    %114 = vmatprep.subr.mxu0 %v71
    %115 = vmatpush1.msra.mxu0 %v70
    %116 = vmatprep.subr.mxu0 %v73
    %117 = vmatpush1.msra.mxu0 %v72
    %118 = vmatprep.subr.mxu0 %v75
    %119 = vmatpush1.msra.mxu0 %v74
    %120 = vmatprep.subr.mxu0 %v77
    %121 = vmatpush1.msra.mxu0 %v76
    %122 = vmatprep.subr.mxu0 %v79
    %123 = vmatpush1.msra.mxu0 %v78
    %124 = vmatprep.subr.mxu0 %v81
    %125 = vmatpush1.msra.mxu0 %v80
    %126 = vmatprep.subr.mxu0 %v83
    %127 = vmatpush1.msra.mxu0 %v82
    %128 = vmatprep.subr.mxu0 %v85
    %129 = vmatpush1.msra.mxu0 %v84
    %130 = vmatprep.subr.mxu0 %v87
    %131 = vmatpush1.msra.mxu0 %v86
    %132 = vmatprep.subr.mxu0 %v89
    %133 = vmatpush1.msra.mxu0 %v88
    %134 = vmatprep.subr.mxu0 %v91
    %135 = vmatpush1.msra.mxu0 %v90
    %136 = vmatprep.subr.mxu0 %v93
    %137 = vmatpush1.msra.mxu0 %v92
    %138 = vmatprep.subr.mxu0 %v95
    %139 = vmatpush1.msra.mxu0 %v94
    %140 = vmatprep.subr.mxu0 %v97
    %141 = vmatpush1.msra.mxu0 %v96
    %142 = vmatprep.subr.mxu0 %v99
    %143 = vmatpush1.msra.mxu0 %v98
    %144 = vmatprep.subr.mxu0 0.0
    %145 = vmatpush1.msra.mxu0 0.0
    %146 = vmatprep.subr.mxu0 0.0
    %147 = vmatpush1.msra.mxu0 0.0
    %148 = vmatprep.subr.mxu0 0.0
    %149 = vmatpush1.msra.mxu0 0.0
    %150 = vmatprep.subr.mxu0 0.0
    %151 = vmatpush1.msra.mxu0 0.0
    %152 = vmatprep.subr.mxu0 0.0
    %153 = vmatpush1.msra.mxu0 0.0
    %154 = vmatprep.subr.mxu0 0.0
    %155 = vmatpush1.msra.mxu0 0.0
    %156 = vmatprep.subr.mxu0 0.0
    %157 = vmatpush1.msra.mxu0 0.0
    %158 = vmatprep.subr.mxu0 0.0
    %159 = vmatpush1.msra.mxu0 0.0
    %160 = vmatprep.subr.mxu0 0.0
    %161 = vmatpush1.msra.mxu0 0.0
    %162 = vmatprep.subr.mxu0 0.0
    %163 = vmatpush1.msra.mxu0 0.0
    %164 = vmatprep.subr.mxu0 0.0
    %165 = vmatpush1.msra.mxu0 0.0
    %166 = vmatprep.subr.mxu0 0.0
    %167 = vmatpush1.msra.mxu0 0.0
    %168 = vmatprep.subr.mxu0 0.0
    %169 = vmatpush1.msra.mxu0 0.0
    %170 = vmatprep.subr.mxu0 0.0
    %171 = vmatpush1.msra.mxu0 0.0
    %172 = vmatprep.subr.mxu0 0.0
    %173 = vmatpush1.msra.mxu0 0.0
    %174 = vmatprep.subr.mxu0 0.0
    %175 = vmatpush1.msra.mxu0 0.0
    %176 = vmatprep.mubr.f32.mxu0 0.0
    %177 = vmatmul.mubr.f32.gmra.mrb[0].mxu0 %v67
    %v178 = vpop.f32.mrb[0].mxu0
    %v179 = vadd.f32 %v105, %v178
    %v180 = vpop.f32.mrb[0].mxu0
    %v181 = vadd.f32 %v109, %v180
    %182 = vdwg.mxu0
    %v183 = vmax.f32 %v179, 0.0
    %v184 = vmax.f32 %v181, 0.0
    %v185 = vld [vmem:[#allocation7] sm:$0xff]
    %v186 = vld [vmem:[#allocation7 + $0x8] sm:$0xff]
    %v187 = vld [vmem:[#allocation7 + $0x10] sm:$0xff]
    %v188 = vld [vmem:[#allocation7 + $0x18] sm:$0xff]
    %v189 = vld [vmem:[#allocation7 + $0x20] sm:$0xff]
    %v190 = vld [vmem:[#allocation7 + $0x28] sm:$0xff]
    %v191 = vld [vmem:[#allocation7 + $0x30] sm:$0xff]
    %v192 = vld [vmem:[#allocation7 + $0x38] sm:$0xff]
    %v193 = vld [vmem:[#allocation7 + $0x40] sm:$0xff]
    %v194 = vld [vmem:[#allocation7 + $0x48] sm:$0xff]
    %v195 = vld [vmem:[#allocation7 + $0x50] sm:$0xff]
    %v196 = vld [vmem:[#allocation7 + $0x58] sm:$0xff]
    %v197 = vld [vmem:[#allocation7 + $0x60] sm:$0xff]
    %v198 = vld [vmem:[#allocation7 + $0x68] sm:$0xff]
    %v199 = vld [vmem:[#allocation7 + $0x70] sm:$0xff]
    %v200 = vld [vmem:[#allocation7 + $0x78] sm:$0xff]
    %v201 = vld [vmem:[#allocation7 + $0x80] sm:$0xff]
    %v202 = vld [vmem:[#allocation7 + $0x88] sm:$0xff]
    %v203 = vld [vmem:[#allocation7 + $0x90] sm:$0xff]
    %v204 = vld [vmem:[#allocation7 + $0x98] sm:$0xff]
    %v205 = vld [vmem:[#allocation7 + $0xa0] sm:$0xff]
    %v206 = vld [vmem:[#allocation7 + $0xa8] sm:$0xff]
    %v207 = vld [vmem:[#allocation7 + $0xb0] sm:$0xff]
    %v208 = vld [vmem:[#allocation7 + $0xb8] sm:$0xff]
    %v209 = vld [vmem:[#allocation7 + $0xc0] sm:$0xff]
    %v210 = vld [vmem:[#allocation7 + $0xc8] sm:$0xff]
    %v211 = vld [vmem:[#allocation7 + $0xd0] sm:$0xff]
    %v212 = vld [vmem:[#allocation7 + $0xd8] sm:$0xff]
    %v213 = vld [vmem:[#allocation7 + $0xe0] sm:$0xff]
    %v214 = vld [vmem:[#allocation7 + $0xe8] sm:$0xff]
    %v215 = vld [vmem:[#allocation7 + $0xf0] sm:$0xff]
    %v216 = vld [vmem:[#allocation7 + $0xf8] sm:$0xff]
    %v217 = vld [vmem:[%s4] sm:$0x1]
    %v219 = vlaneseq
    %v220 = vshrl.u32 %v219, 7
    %v221 = vsub.s32 0, %v220
    %v222 = vrot.slane %v217, %v221
    %224 = vmatprep.subr.mxu0 0.0
    %225 = vmatpush1.msra.mxu0 %v185
    %226 = vmatprep.subr.mxu0 0.0
    %227 = vmatpush1.msra.mxu0 %v186
    %228 = vmatprep.subr.mxu0 0.0
    %229 = vmatpush1.msra.mxu0 %v187
    %230 = vmatprep.subr.mxu0 0.0
    %231 = vmatpush1.msra.mxu0 %v188
    %232 = vmatprep.subr.mxu0 0.0
    %233 = vmatpush1.msra.mxu0 %v189
    %234 = vmatprep.subr.mxu0 0.0
    %235 = vmatpush1.msra.mxu0 %v190
    %236 = vmatprep.subr.mxu0 0.0
    %237 = vmatpush1.msra.mxu0 %v191
    %238 = vmatprep.subr.mxu0 0.0
    %239 = vmatpush1.msra.mxu0 %v192
    %240 = vmatprep.subr.mxu0 0.0
    %241 = vmatpush1.msra.mxu0 %v193
    %242 = vmatprep.subr.mxu0 0.0
    %243 = vmatpush1.msra.mxu0 %v194
    %244 = vmatprep.subr.mxu0 0.0
    %245 = vmatpush1.msra.mxu0 %v195
    %246 = vmatprep.subr.mxu0 0.0
    %247 = vmatpush1.msra.mxu0 %v196
    %248 = vmatprep.subr.mxu0 0.0
    %249 = vmatpush1.msra.mxu0 %v197
    %250 = vmatprep.subr.mxu0 0.0
    %251 = vmatpush1.msra.mxu0 %v198
    %252 = vmatprep.subr.mxu0 0.0
    %253 = vmatpush1.msra.mxu0 %v199
    %254 = vmatprep.subr.mxu0 0.0
    %255 = vmatpush1.msra.mxu0 %v200
    %256 = vmatprep.subr.mxu0 0.0
    %257 = vmatpush1.msra.mxu0 %v201
    %258 = vmatprep.subr.mxu0 0.0
    %259 = vmatpush1.msra.mxu0 %v202
    %260 = vmatprep.subr.mxu0 0.0
    %261 = vmatpush1.msra.mxu0 %v203
    %262 = vmatprep.subr.mxu0 0.0
    %263 = vmatpush1.msra.mxu0 %v204
    %264 = vmatprep.subr.mxu0 0.0
    %265 = vmatpush1.msra.mxu0 %v205
    %266 = vmatprep.subr.mxu0 0.0
    %267 = vmatpush1.msra.mxu0 %v206
    %268 = vmatprep.subr.mxu0 0.0
    %269 = vmatpush1.msra.mxu0 %v207
    %270 = vmatprep.subr.mxu0 0.0
    %271 = vmatpush1.msra.mxu0 %v208
    %272 = vmatprep.subr.mxu0 0.0
    %273 = vmatpush1.msra.mxu0 %v209
    %274 = vmatprep.subr.mxu0 0.0
    %275 = vmatpush1.msra.mxu0 %v210
    %276 = vmatprep.subr.mxu0 0.0
    %277 = vmatpush1.msra.mxu0 %v211
    %278 = vmatprep.subr.mxu0 0.0
    %279 = vmatpush1.msra.mxu0 %v212
    %280 = vmatprep.subr.mxu0 0.0
    %281 = vmatpush1.msra.mxu0 %v213
    %282 = vmatprep.subr.mxu0 0.0
    %283 = vmatpush1.msra.mxu0 %v214
    %284 = vmatprep.subr.mxu0 0.0
    %285 = vmatpush1.msra.mxu0 %v215
    %286 = vmatprep.subr.mxu0 0.0
    %287 = vmatpush1.msra.mxu0 %v216
    %288 = vmatprep.mubr.f32.mxu0 %v184
    %289 = vmatmul.mubr.f32.gmra.mrb[0].mxu0 %v183
    %v290 = vpop.f32.mrb[0].mxu0
    %v291 = vadd.f32 %v222, %v290
    %v292 = vpop.f32.mrb[0].mxu0
    %293 = vdwg.mxu0
    %v294 = vmax.f32 %v291, 0.0
    %v295 = vld [vmem:[%s5] sm:$0x1]
    %v297 = vlaneseq
    %v298 = vshrl.u32 %v297, 7
    %v299 = vsub.s32 0, %v298
    %v300 = vrot.slane %v295, %v299
    %v302 = vmul.f32 %v294, %v300
    %303 = vadd.xlane.f32.xlu0 %v302
    %v304 = vpop.xlane.xlu0 %303
    %v305 = vld [vmem:[#allocation2] sm:$0x1]
    %v307 = vlaneseq
    %v308 = vshrl.u32 %v307, 7
    %v309 = vsub.s32 0, %v308
    %v310 = vrot.slane %v305, %v309
    %v312 = vadd.f32 %v304, %v310
    %vm313 = vcmask 7168
    %314 = vst.msk [vmem:[%s7] sm:$0xff] %vm313, %v312
    // Predicated region
    $region42: #{tpu_custom_call.1} parent=1 // pred_check
      _
    $region43: #{tpu_custom_call.1} parent=1 // pred_check_branch
      %316 = sbr.rel (0) target = $region45
    $region44: #{tpu_custom_call.1} parent=1 // pred_region
      _
    $region45: #{tpu_custom_call.1} parent=1 // pred_fallthru
      _
    // Predicated region
    $region46: #{tpu_custom_call.1} parent=1 // pred_check
      _
    $region47: #{tpu_custom_call.1} parent=1 // pred_check_branch
      %318 = sbr.rel (0) target = $region49
    $region48: #{tpu_custom_call.1} parent=1 // pred_region
      _
    $region49: #{tpu_custom_call.1} parent=1 // pred_fallthru
      _
    %319 = vsyncpa [#allocation4], 1
    %320 = vsyncpa [#allocation6], 1

</llo_original>
